<compile_context>
chip_gen: v7x
topology: tpu7x:2x2x1
jax: 0.10.0
libtpu: 0.0.40
codegen_flags: <defaults>
</compile_context>

<pallas_src>
import functools
import math

import jax
import jax.numpy as jnp
from jax import lax
from jax.experimental import pallas as pl
from jax.experimental.pallas import tpu as pltpu


NEG_INF_MASK = -1.0e12  # matches the PyTorch module's zero_vec


def _round_up(x, m):
    return ((x + m - 1) // m) * m


def _pick_tile(n):
    # Biggest row/col tile <= problem size; bigger tiles amortize per-grid-step
    # overhead, 128 is the floor for lane-dense f32 tiles.
    for t in (512, 256, 128):
        if n >= t:
            return t
    return 128


def _vmem_limit_bytes():
    # Derive a safe scoped-VMEM cap from physical capacity (64 MiB on v7x,
    # 128 MiB on v5e/v6e) so one tiling compiles on all generations.
    try:
        cap = pltpu.get_tpu_info().vmem_capacity_bytes
    except Exception:
        cap = 64 << 20
    return min(int(cap * 3 // 4), 96 << 20)


def _proj_kernel(x_ref, w_ref, h_ref):
    # Fused projection: W|W2|W3 concatenated along the output dim so the skinny
    # K=Fin contraction is pushed through the MXU once per row block.
    h_ref[...] = jnp.dot(
        x_ref[...], w_ref[...], preferred_element_type=jnp.float32
    ).astype(h_ref.dtype)


def _gat_attn_kernel(nnz_ref, h_ref, h2_ref, h3_ref, adj_ref, out_ref,
                     m_sc, l_sc, acc_sc, *, neg_slope):
    qi = pl.program_id(0)
    kv = pl.program_id(1)

    @pl.when(kv == 0)
    def _init():
        m_sc[...] = jnp.full_like(m_sc[...], -jnp.inf)
        l_sc[...] = jnp.zeros_like(l_sc[...])
        acc_sc[...] = jnp.zeros_like(acc_sc[...])

    # Skip column blocks whose adjacency tile is entirely zero (block-sparse
    # graphs): masked entries contribute exactly 0 anyway (every real row has
    # at least one edge, so exp(-1e12 - rowmax) underflows to 0).
    @pl.when(nnz_ref[qi, kv] > 0)
    def _update():
        # e = LeakyReLU(h @ h2^T); contract last dims directly (no transpose).
        e = lax.dot_general(h_ref[...], h2_ref[...],
                            (((1,), (1,)), ((), ())),
                            preferred_element_type=jnp.float32)
        e = jnp.where(e > 0, e, neg_slope * e)                       # LeakyReLU (f32)
        e = jnp.where(adj_ref[...] > 0, e, jnp.float32(NEG_INF_MASK))

        m_prev = m_sc[...]
        m_new = jnp.maximum(m_prev, jnp.max(e, axis=1, keepdims=True))
        corr = jnp.exp(m_prev - m_new)
        p = jnp.exp(e - m_new)                                       # f32 softmax math
        l_sc[...] = corr * l_sc[...] + jnp.sum(p, axis=1, keepdims=True)
        acc_sc[...] = corr * acc_sc[...] + jnp.dot(
            p.astype(h3_ref.dtype), h3_ref[...],
            preferred_element_type=jnp.float32)
        m_sc[...] = m_new

    @pl.when(kv == pl.num_programs(1) - 1)
    def _finalize():
        # TODO(synk): training-mode attention dropout not implemented (eval-mode identity).
        hp = acc_sc[...] * pl.reciprocal(l_sc[...], approx=True)
        # ELU(alpha=1). min() keeps exp finite on the untaken positive branch;
        # expm1 avoided since not all Mosaic versions lower it (cancellation is
        # far below output tolerance at f32).
        out_ref[...] = jnp.where(hp > 0, hp, jnp.exp(jnp.minimum(hp, 0.0)) - 1.0)


def gat_forward(inp, adj, W, W2, W3, alpha=0.2, mxu_dtype=jnp.float32):
    """GraphAttentionLayer forward (concat=True branch, eval mode)."""
    N, Fin = inp.shape
    Fout = W.shape[1]

    tile = _pick_tile(N)
    n_pad = _round_up(max(N, tile), tile)
    fin_pad = _round_up(Fin, 128)
    fout_pad = _round_up(Fout, 128)
    n_blocks = n_pad // tile

    # Zero padding is exact: zero weight rows contribute nothing; padded adj
    # entries are masked out; padded query rows are sliced off at the end.
    x_pad = jnp.zeros((n_pad, fin_pad), jnp.float32).at[:N, :Fin].set(
        inp.astype(jnp.float32))
    w_cat = jnp.zeros((fin_pad, 3 * fout_pad), jnp.float32)
    w_cat = (w_cat.at[:Fin, 0 * fout_pad:0 * fout_pad + Fout].set(W)
                  .at[:Fin, 1 * fout_pad:1 * fout_pad + Fout].set(W2)
                  .at[:Fin, 2 * fout_pad:2 * fout_pad + Fout].set(W3))

    # Adjacency as a bf16 0/1 mask: only its sign is used; it is the largest
    # (N^2) input so halving its bytes halves its HBM traffic / VMEM footprint.
    adj_mask = jnp.zeros((n_pad, n_pad), jnp.bfloat16).at[:N, :N].set(
        (adj > 0).astype(jnp.bfloat16))

    # Per-(row-block, col-block) nonzero counts for block-sparse skipping.
    nnz = (adj_mask.reshape(n_blocks, tile, n_blocks, tile) > 0).sum(
        axis=(1, 3), dtype=jnp.int32)

    vmem_limit = _vmem_limit_bytes()

    # ---- Stage 1: fused projections H = x @ [W | W2 | W3], row-tiled. ----
    H = pl.pallas_call(
        _proj_kernel,
        out_shape=jax.ShapeDtypeStruct((n_pad, 3 * fout_pad), mxu_dtype),
        grid=(n_blocks,),
        in_specs=[pl.BlockSpec((tile, fin_pad), lambda i: (i, 0)),
                  pl.BlockSpec((fin_pad, 3 * fout_pad), lambda i: (0, 0))],
        out_specs=pl.BlockSpec((tile, 3 * fout_pad), lambda i: (i, 0)),
        compiler_params=pltpu.CompilerParams(
            dimension_semantics=("parallel",),
            vmem_limit_bytes=vmem_limit),
    )(x_pad.astype(mxu_dtype), w_cat.astype(mxu_dtype))

    # ---- Stage 2: flash-style masked attention + ELU, (row, col) grid. ----
    kernel = functools.partial(_gat_attn_kernel, neg_slope=float(alpha))
    out_pad = pl.pallas_call(
        kernel,
        out_shape=jax.ShapeDtypeStruct((n_pad, fout_pad), jnp.float32),
        grid_spec=pltpu.PrefetchScalarGridSpec(
            num_scalar_prefetch=1,
            grid=(n_blocks, n_blocks),
            in_specs=[
                pl.BlockSpec((tile, fout_pad), lambda qi, kv, _nnz: (qi, 0)),   # h
                pl.BlockSpec((tile, fout_pad), lambda qi, kv, _nnz: (kv, 1)),   # h2
                pl.BlockSpec((tile, fout_pad), lambda qi, kv, _nnz: (kv, 2)),   # h3
                pl.BlockSpec((tile, tile),     lambda qi, kv, _nnz: (qi, kv)),  # adj
            ],
            out_specs=pl.BlockSpec((tile, fout_pad), lambda qi, kv, _nnz: (qi, 0)),
            scratch_shapes=[pltpu.VMEM((tile, 1), jnp.float32),        # m
                            pltpu.VMEM((tile, 1), jnp.float32),        # l
                            pltpu.VMEM((tile, fout_pad), jnp.float32)]),  # acc
        compiler_params=pltpu.CompilerParams(
            dimension_semantics=("parallel", "arbitrary"),
            vmem_limit_bytes=vmem_limit),
    )(nnz, H, H, H, adj_mask)

    return out_pad[:N, :Fout]


def xavier_uniform(key, shape, gain):
    fan_in, fan_out = shape
    bound = gain * math.sqrt(6.0 / (fan_in + fan_out))
    return jax.random.uniform(key, shape, jnp.float32, minval=-bound, maxval=bound)


def gat_reference(inp, adj, W, W2, W3, alpha=0.2):
    h = inp @ W
    h2 = inp @ W2
    e = h @ h2.T
    e = jnp.where(e > 0, e, alpha * e)
    att = jnp.where(adj > 0, e, jnp.full_like(e, NEG_INF_MASK))
    att = jax.nn.softmax(att, axis=1)
    hp = att @ (inp @ W3)
    return jnp.where(hp > 0, hp, jnp.exp(hp) - 1.0)


if __name__ == "__main__":
    # Small shapes consistent with the module: N nodes, in_features -> out_features.
    N, in_features, out_features = 8, 16, 32
    alpha = 0.2
    gain = 1.414

    key = jax.random.PRNGKey(0)
    k_inp, k_adj, k_w, k_w2, k_w3 = jax.random.split(key, 5)

    inp = jax.random.normal(k_inp, (N, in_features), dtype=jnp.float32)
    # Binary adjacency with self-loops (every row has at least one edge).
    adj = (jax.random.uniform(k_adj, (N, N)) > 0.5).astype(jnp.float32)
    adj = jnp.maximum(adj, jnp.eye(N, dtype=jnp.float32))

    W = xavier_uniform(k_w, (in_features, out_features), gain)
    W2 = xavier_uniform(k_w2, (in_features, out_features), gain)
    W3 = xavier_uniform(k_w3, (in_features, out_features), gain)

    out = gat_forward(inp, adj, W, W2, W3, alpha=alpha)
    jax.block_until_ready(out)

    ref = gat_reference(inp, adj, W, W2, W3, alpha=alpha)
    assert out.shape == ref.shape
    assert jnp.allclose(out, ref, atol=5e-3, rtol=5e-3), float(jnp.max(jnp.abs(out - ref)))

    # Exercise the bf16-MXU path too (looser numerics; just verify it runs clean).
    out_bf16 = gat_forward(inp, adj, W, W2, W3, alpha=alpha, mxu_dtype=jnp.bfloat16)
    jax.block_until_ready(out_bf16)
    assert bool(jnp.all(jnp.isfinite(out_bf16)))

    print("KERNEL_OK")
</pallas_src>

<mosaic_0001>
module attributes {stable_mosaic.version = 11 : i64} {
  func.func @_proj_kernel(%arg0: i32, %arg1: memref<128x128xf32, #tpu.memory_space<vmem>>, %arg2: memref<128x384xf32, #tpu.memory_space<vmem>>, %arg3: memref<128x384xf32, #tpu.memory_space<vmem>>) attributes {dimension_semantics = [#tpu.dimension_semantics<parallel>], iteration_bounds = array<i64: 1>, scalar_prefetch = 0 : i64, scratch_operands = 0 : i64, tpu.core_type = #tpu.core_type<tc>, window_params = [{transform_indices = @transform_0, window_bounds = array<i64: 128, 128>}, {pipeline_mode = #tpu.pipeline_mode<synchronous>, transform_indices = @transform_1, window_bounds = array<i64: 128, 384>}, {transform_indices = @transform_2, window_bounds = array<i64: 128, 384>}]} {
    %c0 = arith.constant 0 : index
    %c0_0 = arith.constant 0 : index
    %0 = vector.load %arg1[%c0, %c0_0] : memref<128x128xf32, #tpu.memory_space<vmem>>, vector<128x128xf32>
    %c0_1 = arith.constant 0 : index
    %c0_2 = arith.constant 0 : index
    %1 = vector.load %arg2[%c0_1, %c0_2] : memref<128x384xf32, #tpu.memory_space<vmem>>, vector<128x384xf32>
    %cst = arith.constant dense<0.000000e+00> : vector<128x384xf32>
    %2 = tpu.matmul %0, %1, %cst {dimension_numbers = #tpu.dot_dimension_numbers<[1], [0], [0], [1], [0, 0, 1, 1], [], []>} : vector<128x128xf32>, vector<128x384xf32>, vector<128x384xf32> -> vector<128x384xf32>
    %c0_3 = arith.constant 0 : index
    %c0_4 = arith.constant 0 : index
    %3 = vector.load %arg3[%c0_3, %c0_4] : memref<128x384xf32, #tpu.memory_space<vmem>>, vector<128x384xf32>
    tpu.vector_store %arg3[%c0_3, %c0_4], %2 {strides = array<i32>} : memref<128x384xf32, #tpu.memory_space<vmem>>, vector<128x384xf32>,
    return
  }
  func.func @transform_0(%arg0: i32) -> (i32, i32) {
    %c0_i32 = arith.constant 0 : i32
    %c0_i32_0 = arith.constant 0 : i32
    return %arg0, %c0_i32 : i32, i32
  }
  func.func @transform_1(%arg0: i32) -> (i32, i32) {
    %c0_i32 = arith.constant 0 : i32
    %c0_i32_0 = arith.constant 0 : i32
    %c0_i32_1 = arith.constant 0 : i32
    return %c0_i32, %c0_i32_0 : i32, i32
  }
  func.func @transform_2(%arg0: i32) -> (i32, i32) {
    %c0_i32 = arith.constant 0 : i32
    %c0_i32_0 = arith.constant 0 : i32
    return %arg0, %c0_i32 : i32, i32
  }
}

</mosaic_0001>

<llo_original>
// kernel: tpu_custom_call.1
$region0: #{tpu_custom_call.1}
  #allocation0 [shape = 'u32[]', space=smem, size = 0x4, offset = 0x4, fixed_abs, tag = 'smem constant byte address 0x4 - core index']
  #allocation1 [shape = 'u32[144,128]{1,0:T(1,128)}', space=vmem, size = 0x12000, scoped, tag = 'internal scratch']
  %s0 = inlined_call_operand.hbm [shape: f32[128,128], index: 0, kind: input, shape index: {}]
  %s1 = inlined_call_operand.hbm [shape: f32[128,384], index: 1, kind: input, shape index: {}]
  %s2 = inlined_call_operand.hbm [shape: f32[128,384], index: 2, kind: output, shape index: {}]
  %s3 = sld [smem:[#allocation0]]
  $region26: #{tpu_custom_call.1} parent=0
    _
  %s5 = ssub.s32 1, %s3
  %s6 = scalar_select 0, %s5, %s3
  $region1: #{tpu_custom_call.1} parent=0
    #allocation2 [shape = 'u8[65536]{0}', space=vmem, size = 0x10000, scoped, tag = 'input window, operand 0, single buffered']
    #allocation3 [shape = 's32[1]{0}', space=sflag, size = 0x4, scoped, tag = 'scoped memory for tpu_custom_call.1']
    #allocation4 [shape = 's32[1]{0}', space=sflag, size = 0x4, scoped, tag = 'scoped memory for tpu_custom_call.1']
    #allocation5 [shape = 'u8[196608]{0}', space=vmem, size = 0x30000, scoped, tag = 'input window, operand 1, single buffered']
    #allocation6 [shape = 's32[1]{0}', space=sflag, size = 0x4, scoped, tag = 'scoped memory for tpu_custom_call.1']
    #allocation7 [shape = 'u8[196608]{0}', space=vmem, size = 0x30000, scoped, tag = 'output window, operand 0, single buffered']
    %7 = vsyncpa [#allocation3], 0
    %8 = vsyncpa [#allocation6], 0
    %9 = vsyncpa [#allocation4], 0
    // Predicated region
    $region2: #{tpu_custom_call.1} parent=1 // pred_check
      _
    $region3: #{tpu_custom_call.1} parent=1 // pred_check_branch
      %11 = sbr.rel (0) target = $region5
    $region4: #{tpu_custom_call.1} parent=1 // pred_region
      %s13 = ssub.s32 2048, 2048
      %14 = vsyncadd [#allocation3], %s13
      %s15 = sshll.u32 [#allocation2], 4
      %s16 = int_to_ptr.vmem [resolvable:$true] %s15
      %21 = dma.hbm_to_vmem [thread:$0]  %s0, 2048, %s16, [#allocation3], 128, 128, 8
    $region5: #{tpu_custom_call.1} parent=1 // pred_fallthru
      _
    // Predicated region
    $region6: #{tpu_custom_call.1} parent=1 // pred_check
      _
    $region7: #{tpu_custom_call.1} parent=1 // pred_check_branch
      %23 = sbr.rel (0) target = $region9
    $region8: #{tpu_custom_call.1} parent=1 // pred_region
      %s25 = ssub.s32 6144, 6144
      %26 = vsyncadd [#allocation6], %s25
      %s27 = sshll.u32 [#allocation5], 4
      %s28 = int_to_ptr.vmem [resolvable:$true] %s27
      %33 = dma.hbm_to_vmem [thread:$0]  %s1, 6144, %s28, [#allocation6], 384, 384, 24
    $region9: #{tpu_custom_call.1} parent=1 // pred_fallthru
      _
    // Predicated region
    $region10: #{tpu_custom_call.1} parent=1 // pred_check
      _
    $region11: #{tpu_custom_call.1} parent=1 // pred_check_branch
      %35 = sbr.rel (0) target = $region13
    $region12: #{tpu_custom_call.1} parent=1 // pred_region
      %36 = dma.done [#allocation3], 2048
    $region13: #{tpu_custom_call.1} parent=1 // pred_fallthru
      _
    // Predicated region
    $region14: #{tpu_custom_call.1} parent=1 // pred_check
      _
    $region15: #{tpu_custom_call.1} parent=1 // pred_check_branch
      %38 = sbr.rel (0) target = $region17
    $region16: #{tpu_custom_call.1} parent=1 // pred_region
      %39 = dma.done [#allocation6], 6144
    $region17: #{tpu_custom_call.1} parent=1 // pred_fallthru
      _
    %v40 = vld [vmem:[#allocation2] sm:$0xff]
    %v41 = vld [vmem:[#allocation2 + $0x8] sm:$0xff]
    %v42 = vld [vmem:[#allocation2 + $0x10] sm:$0xff]
    %v43 = vld [vmem:[#allocation2 + $0x18] sm:$0xff]
    %v44 = vld [vmem:[#allocation2 + $0x20] sm:$0xff]
    %v45 = vld [vmem:[#allocation2 + $0x28] sm:$0xff]
    %v46 = vld [vmem:[#allocation2 + $0x30] sm:$0xff]
    %v47 = vld [vmem:[#allocation2 + $0x38] sm:$0xff]
    %v48 = vld [vmem:[#allocation2 + $0x40] sm:$0xff]
    %v49 = vld [vmem:[#allocation2 + $0x48] sm:$0xff]
    %v50 = vld [vmem:[#allocation2 + $0x50] sm:$0xff]
    %v51 = vld [vmem:[#allocation2 + $0x58] sm:$0xff]
    %v52 = vld [vmem:[#allocation2 + $0x60] sm:$0xff]
    %v53 = vld [vmem:[#allocation2 + $0x68] sm:$0xff]
    %v54 = vld [vmem:[#allocation2 + $0x70] sm:$0xff]
    %v55 = vld [vmem:[#allocation2 + $0x78] sm:$0xff]
    %v56 = vld [vmem:[#allocation5] sm:$0xff]
    %v57 = vld [vmem:[#allocation5 + $0x8] sm:$0xff]
    %v58 = vld [vmem:[#allocation5 + $0x10] sm:$0xff]
    %v59 = vld [vmem:[#allocation5 + $0x18] sm:$0xff]
    %v60 = vld [vmem:[#allocation5 + $0x20] sm:$0xff]
    %v61 = vld [vmem:[#allocation5 + $0x28] sm:$0xff]
    %v62 = vld [vmem:[#allocation5 + $0x30] sm:$0xff]
    %v63 = vld [vmem:[#allocation5 + $0x38] sm:$0xff]
    %v64 = vld [vmem:[#allocation5 + $0x40] sm:$0xff]
    %v65 = vld [vmem:[#allocation5 + $0x48] sm:$0xff]
    %v66 = vld [vmem:[#allocation5 + $0x50] sm:$0xff]
    %v67 = vld [vmem:[#allocation5 + $0x58] sm:$0xff]
    %v68 = vld [vmem:[#allocation5 + $0x60] sm:$0xff]
    %v69 = vld [vmem:[#allocation5 + $0x68] sm:$0xff]
    %v70 = vld [vmem:[#allocation5 + $0x70] sm:$0xff]
    %v71 = vld [vmem:[#allocation5 + $0x78] sm:$0xff]
    %v72 = vld [vmem:[#allocation5 + $0x80] sm:$0xff]
    %v73 = vld [vmem:[#allocation5 + $0x88] sm:$0xff]
    %v74 = vld [vmem:[#allocation5 + $0x90] sm:$0xff]
    %v75 = vld [vmem:[#allocation5 + $0x98] sm:$0xff]
    %v76 = vld [vmem:[#allocation5 + $0xa0] sm:$0xff]
    %v77 = vld [vmem:[#allocation5 + $0xa8] sm:$0xff]
    %v78 = vld [vmem:[#allocation5 + $0xb0] sm:$0xff]
    %v79 = vld [vmem:[#allocation5 + $0xb8] sm:$0xff]
    %v80 = vld [vmem:[#allocation5 + $0xc0] sm:$0xff]
    %v81 = vld [vmem:[#allocation5 + $0xc8] sm:$0xff]
    %v82 = vld [vmem:[#allocation5 + $0xd0] sm:$0xff]
    %v83 = vld [vmem:[#allocation5 + $0xd8] sm:$0xff]
    %v84 = vld [vmem:[#allocation5 + $0xe0] sm:$0xff]
    %v85 = vld [vmem:[#allocation5 + $0xe8] sm:$0xff]
    %v86 = vld [vmem:[#allocation5 + $0xf0] sm:$0xff]
    %v87 = vld [vmem:[#allocation5 + $0xf8] sm:$0xff]
    %v88 = vld [vmem:[#allocation5 + $0x100] sm:$0xff]
    %v89 = vld [vmem:[#allocation5 + $0x108] sm:$0xff]
    %v90 = vld [vmem:[#allocation5 + $0x110] sm:$0xff]
    %v91 = vld [vmem:[#allocation5 + $0x118] sm:$0xff]
    %v92 = vld [vmem:[#allocation5 + $0x120] sm:$0xff]
    %v93 = vld [vmem:[#allocation5 + $0x128] sm:$0xff]
    %v94 = vld [vmem:[#allocation5 + $0x130] sm:$0xff]
    %v95 = vld [vmem:[#allocation5 + $0x138] sm:$0xff]
    %v96 = vld [vmem:[#allocation5 + $0x140] sm:$0xff]
    %v97 = vld [vmem:[#allocation5 + $0x148] sm:$0xff]
    %v98 = vld [vmem:[#allocation5 + $0x150] sm:$0xff]
    %v99 = vld [vmem:[#allocation5 + $0x158] sm:$0xff]
    %v100 = vld [vmem:[#allocation5 + $0x160] sm:$0xff]
    %v101 = vld [vmem:[#allocation5 + $0x168] sm:$0xff]
    %v102 = vld [vmem:[#allocation5 + $0x170] sm:$0xff]
    %v103 = vld [vmem:[#allocation5 + $0x178] sm:$0xff]
    %104 = vmatprep.subr.mxu0 %v57
    %105 = vmatpush1.msra.mxu0 %v56
    %106 = vmatprep.subr.mxu0 %v60
    %107 = vmatpush1.msra.mxu0 %v59
    %108 = vmatprep.subr.mxu0 %v63
    %109 = vmatpush1.msra.mxu0 %v62
    %110 = vmatprep.subr.mxu0 %v66
    %111 = vmatpush1.msra.mxu0 %v65
    %112 = vmatprep.subr.mxu0 %v69
    %113 = vmatpush1.msra.mxu0 %v68
    %114 = vmatprep.subr.mxu0 %v72
    %115 = vmatpush1.msra.mxu0 %v71
    %116 = vmatprep.subr.mxu0 %v75
    %117 = vmatpush1.msra.mxu0 %v74
    %118 = vmatprep.subr.mxu0 %v78
    %119 = vmatpush1.msra.mxu0 %v77
    %120 = vmatprep.subr.mxu0 %v81
    %121 = vmatpush1.msra.mxu0 %v80
    %122 = vmatprep.subr.mxu0 %v84
    %123 = vmatpush1.msra.mxu0 %v83
    %124 = vmatprep.subr.mxu0 %v87
    %125 = vmatpush1.msra.mxu0 %v86
    %126 = vmatprep.subr.mxu0 %v90
    %127 = vmatpush1.msra.mxu0 %v89
    %128 = vmatprep.subr.mxu0 %v93
    %129 = vmatpush1.msra.mxu0 %v92
    %130 = vmatprep.subr.mxu0 %v96
    %131 = vmatpush1.msra.mxu0 %v95
    %132 = vmatprep.subr.mxu0 %v99
    %133 = vmatpush1.msra.mxu0 %v98
    %134 = vmatprep.subr.mxu0 %v102
    %135 = vmatpush1.msra.mxu0 %v101
    %136 = vmatprep.subr.mxu0 0.0
    %137 = vmatpush1.msra.mxu0 0.0
    %138 = vmatprep.subr.mxu0 0.0
    %139 = vmatpush1.msra.mxu0 0.0
    %140 = vmatprep.subr.mxu0 0.0
    %141 = vmatpush1.msra.mxu0 0.0
    %142 = vmatprep.subr.mxu0 0.0
    %143 = vmatpush1.msra.mxu0 0.0
    %144 = vmatprep.subr.mxu0 0.0
    %145 = vmatpush1.msra.mxu0 0.0
    %146 = vmatprep.subr.mxu0 0.0
    %147 = vmatpush1.msra.mxu0 0.0
    %148 = vmatprep.subr.mxu0 0.0
    %149 = vmatpush1.msra.mxu0 0.0
    %150 = vmatprep.subr.mxu0 0.0
    %151 = vmatpush1.msra.mxu0 0.0
    %152 = vmatprep.subr.mxu0 0.0
    %153 = vmatpush1.msra.mxu0 0.0
    %154 = vmatprep.subr.mxu0 0.0
    %155 = vmatpush1.msra.mxu0 0.0
    %156 = vmatprep.subr.mxu0 0.0
    %157 = vmatpush1.msra.mxu0 0.0
    %158 = vmatprep.subr.mxu0 0.0
    %159 = vmatpush1.msra.mxu0 0.0
    %160 = vmatprep.subr.mxu0 0.0
    %161 = vmatpush1.msra.mxu0 0.0
    %162 = vmatprep.subr.mxu0 0.0
    %163 = vmatpush1.msra.mxu0 0.0
    %164 = vmatprep.subr.mxu0 0.0
    %165 = vmatpush1.msra.mxu0 0.0
    %166 = vmatprep.subr.mxu0 0.0
    %167 = vmatpush1.msra.mxu0 0.0
    %168 = vmatprep.mubr.f32.mxu0 0.0
    %169 = vmatmul.mubr.f32.gmra.mrb[0].mxu0 %v40
    %v170 = vpop.f32.mrb[0].mxu0
    %v171 = vadd.f32 0.0, %v170
    %v172 = vpop.f32.mrb[0].mxu0
    %v173 = vadd.f32 0.0, %v172
    %174 = vmatprep.mubr.f32.mxu0 0.0
    %175 = vmatmul.mubr.f32.gmra.mrb[0].mxu0 %v41
    %v176 = vpop.f32.mrb[0].mxu0
    %v177 = vadd.f32 0.0, %v176
    %v178 = vpop.f32.mrb[0].mxu0
    %v179 = vadd.f32 0.0, %v178
    %180 = vmatprep.mubr.f32.mxu0 0.0
    %181 = vmatmul.mubr.f32.gmra.mrb[0].mxu0 %v42
    %v182 = vpop.f32.mrb[0].mxu0
    %v183 = vadd.f32 0.0, %v182
    %v184 = vpop.f32.mrb[0].mxu0
    %v185 = vadd.f32 0.0, %v184
    %186 = vmatprep.mubr.f32.mxu0 0.0
    %187 = vmatmul.mubr.f32.gmra.mrb[0].mxu0 %v43
    %v188 = vpop.f32.mrb[0].mxu0
    %v189 = vadd.f32 0.0, %v188
    %v190 = vpop.f32.mrb[0].mxu0
    %v191 = vadd.f32 0.0, %v190
    %192 = vmatprep.mubr.f32.mxu0 0.0
    %193 = vmatmul.mubr.f32.gmra.mrb[0].mxu0 %v44
    %v194 = vpop.f32.mrb[0].mxu0
    %v195 = vadd.f32 0.0, %v194
    %v196 = vpop.f32.mrb[0].mxu0
    %v197 = vadd.f32 0.0, %v196
    %198 = vmatprep.mubr.f32.mxu0 0.0
    %199 = vmatmul.mubr.f32.gmra.mrb[0].mxu0 %v45
    %v200 = vpop.f32.mrb[0].mxu0
    %v201 = vadd.f32 0.0, %v200
    %v202 = vpop.f32.mrb[0].mxu0
    %v203 = vadd.f32 0.0, %v202
    %204 = vmatprep.mubr.f32.mxu0 0.0
    %205 = vmatmul.mubr.f32.gmra.mrb[0].mxu0 %v46
    %v206 = vpop.f32.mrb[0].mxu0
    %v207 = vadd.f32 0.0, %v206
    %v208 = vpop.f32.mrb[0].mxu0
    %v209 = vadd.f32 0.0, %v208
    %210 = vmatprep.mubr.f32.mxu0 0.0
    %211 = vmatmul.mubr.f32.gmra.mrb[0].mxu0 %v47
    %v212 = vpop.f32.mrb[0].mxu0
    %v213 = vadd.f32 0.0, %v212
    %v214 = vpop.f32.mrb[0].mxu0
    %v215 = vadd.f32 0.0, %v214
    %216 = vmatprep.mubr.f32.mxu0 0.0
    %217 = vmatmul.mubr.f32.gmra.mrb[0].mxu0 %v48
    %v218 = vpop.f32.mrb[0].mxu0
    %v219 = vadd.f32 0.0, %v218
    %v220 = vpop.f32.mrb[0].mxu0
    %v221 = vadd.f32 0.0, %v220
    %222 = vmatprep.mubr.f32.mxu0 0.0
    %223 = vmatmul.mubr.f32.gmra.mrb[0].mxu0 %v49
    %v224 = vpop.f32.mrb[0].mxu0
    %v225 = vadd.f32 0.0, %v224
    %v226 = vpop.f32.mrb[0].mxu0
    %v227 = vadd.f32 0.0, %v226
    %228 = vmatprep.mubr.f32.mxu0 0.0
    %229 = vmatmul.mubr.f32.gmra.mrb[0].mxu0 %v50
    %v230 = vpop.f32.mrb[0].mxu0
    %v231 = vadd.f32 0.0, %v230
    %v232 = vpop.f32.mrb[0].mxu0
    %v233 = vadd.f32 0.0, %v232
    %234 = vmatprep.mubr.f32.mxu0 0.0
    %235 = vmatmul.mubr.f32.gmra.mrb[0].mxu0 %v51
    %v236 = vpop.f32.mrb[0].mxu0
    %v237 = vadd.f32 0.0, %v236
    %v238 = vpop.f32.mrb[0].mxu0
    %v239 = vadd.f32 0.0, %v238
    %240 = vmatprep.mubr.f32.mxu0 0.0
    %241 = vmatmul.mubr.f32.gmra.mrb[0].mxu0 %v52
    %v242 = vpop.f32.mrb[0].mxu0
    %v243 = vadd.f32 0.0, %v242
    %v244 = vpop.f32.mrb[0].mxu0
    %v245 = vadd.f32 0.0, %v244
    %246 = vmatprep.mubr.f32.mxu0 0.0
    %247 = vmatmul.mubr.f32.gmra.mrb[0].mxu0 %v53
    %v248 = vpop.f32.mrb[0].mxu0
    %v249 = vadd.f32 0.0, %v248
    %v250 = vpop.f32.mrb[0].mxu0
    %v251 = vadd.f32 0.0, %v250
    %252 = vmatprep.mubr.f32.mxu0 0.0
    %253 = vmatmul.mubr.f32.gmra.mrb[0].mxu0 %v54
    %v254 = vpop.f32.mrb[0].mxu0
    %v255 = vadd.f32 0.0, %v254
    %v256 = vpop.f32.mrb[0].mxu0
    %v257 = vadd.f32 0.0, %v256
    %258 = vmatprep.mubr.f32.mxu0 0.0
    %259 = vmatmul.mubr.f32.gmra.mrb[0].mxu0 %v55
    %v260 = vpop.f32.mrb[0].mxu0
    %v261 = vadd.f32 0.0, %v260
    %v262 = vpop.f32.mrb[0].mxu0
    %v263 = vadd.f32 0.0, %v262
    %264 = vdwg.mxu0
    %265 = vmatprep.subr.mxu0 0.0
    %266 = vmatpush1.msra.mxu0 %v58
    %267 = vmatprep.subr.mxu0 0.0
    %268 = vmatpush1.msra.mxu0 %v61
    %269 = vmatprep.subr.mxu0 0.0
    %270 = vmatpush1.msra.mxu0 %v64
    %271 = vmatprep.subr.mxu0 0.0
    %272 = vmatpush1.msra.mxu0 %v67
    %273 = vmatprep.subr.mxu0 0.0
    %274 = vmatpush1.msra.mxu0 %v70
    %275 = vmatprep.subr.mxu0 0.0
    %276 = vmatpush1.msra.mxu0 %v73
    %277 = vmatprep.subr.mxu0 0.0
    %278 = vmatpush1.msra.mxu0 %v76
    %279 = vmatprep.subr.mxu0 0.0
    %280 = vmatpush1.msra.mxu0 %v79
    %281 = vmatprep.subr.mxu0 0.0
    %282 = vmatpush1.msra.mxu0 %v82
    %283 = vmatprep.subr.mxu0 0.0
    %284 = vmatpush1.msra.mxu0 %v85
    %285 = vmatprep.subr.mxu0 0.0
    %286 = vmatpush1.msra.mxu0 %v88
    %287 = vmatprep.subr.mxu0 0.0
    %288 = vmatpush1.msra.mxu0 %v91
    %289 = vmatprep.subr.mxu0 0.0
    %290 = vmatpush1.msra.mxu0 %v94
    %291 = vmatprep.subr.mxu0 0.0
    %292 = vmatpush1.msra.mxu0 %v97
    %293 = vmatprep.subr.mxu0 0.0
    %294 = vmatpush1.msra.mxu0 %v100
    %295 = vmatprep.subr.mxu0 0.0
    %296 = vmatpush1.msra.mxu0 %v103
    %297 = vmatprep.subr.mxu0 0.0
    %298 = vmatpush1.msra.mxu0 0.0
    %299 = vmatprep.subr.mxu0 0.0
    %300 = vmatpush1.msra.mxu0 0.0
    %301 = vmatprep.subr.mxu0 0.0
    %302 = vmatpush1.msra.mxu0 0.0
    %303 = vmatprep.subr.mxu0 0.0
    %304 = vmatpush1.msra.mxu0 0.0
    %305 = vmatprep.subr.mxu0 0.0
    %306 = vmatpush1.msra.mxu0 0.0
    %307 = vmatprep.subr.mxu0 0.0
    %308 = vmatpush1.msra.mxu0 0.0
    %309 = vmatprep.subr.mxu0 0.0
    %310 = vmatpush1.msra.mxu0 0.0
    %311 = vmatprep.subr.mxu0 0.0
    %312 = vmatpush1.msra.mxu0 0.0
    %313 = vmatprep.subr.mxu0 0.0
    %314 = vmatpush1.msra.mxu0 0.0
    %315 = vmatprep.subr.mxu0 0.0
    %316 = vmatpush1.msra.mxu0 0.0
    %317 = vmatprep.subr.mxu0 0.0
    %318 = vmatpush1.msra.mxu0 0.0
    %319 = vmatprep.subr.mxu0 0.0
    %320 = vmatpush1.msra.mxu0 0.0
    %321 = vmatprep.subr.mxu0 0.0
    %322 = vmatpush1.msra.mxu0 0.0
    %323 = vmatprep.subr.mxu0 0.0
    %324 = vmatpush1.msra.mxu0 0.0
    %325 = vmatprep.subr.mxu0 0.0
    %326 = vmatpush1.msra.mxu0 0.0
    %327 = vmatprep.subr.mxu0 0.0
    %328 = vmatpush1.msra.mxu0 0.0
    %329 = vmatprep.mubr.f32.mxu0 0.0
    %330 = vmatmul.mubr.f32.gmra.mrb[0].mxu0 %v40
    %v331 = vpop.f32.mrb[0].mxu0
    %v332 = vadd.f32 0.0, %v331
    %v333 = vpop.f32.mrb[0].mxu0
    %334 = vmatprep.mubr.f32.mxu0 0.0
    %335 = vmatmul.mubr.f32.gmra.mrb[0].mxu0 %v41
    %v336 = vpop.f32.mrb[0].mxu0
    %v337 = vadd.f32 0.0, %v336
    %v338 = vpop.f32.mrb[0].mxu0
    %339 = vmatprep.mubr.f32.mxu0 0.0
    %340 = vmatmul.mubr.f32.gmra.mrb[0].mxu0 %v42
    %v341 = vpop.f32.mrb[0].mxu0
    %v342 = vadd.f32 0.0, %v341
    %v343 = vpop.f32.mrb[0].mxu0
    %344 = vmatprep.mubr.f32.mxu0 0.0
    %345 = vmatmul.mubr.f32.gmra.mrb[0].mxu0 %v43
    %v346 = vpop.f32.mrb[0].mxu0
    %v347 = vadd.f32 0.0, %v346
    %v348 = vpop.f32.mrb[0].mxu0
    %349 = vmatprep.mubr.f32.mxu0 0.0
    %350 = vmatmul.mubr.f32.gmra.mrb[0].mxu0 %v44
    %v351 = vpop.f32.mrb[0].mxu0
    %v352 = vadd.f32 0.0, %v351
    %v353 = vpop.f32.mrb[0].mxu0
    %354 = vmatprep.mubr.f32.mxu0 0.0
    %355 = vmatmul.mubr.f32.gmra.mrb[0].mxu0 %v45
    %v356 = vpop.f32.mrb[0].mxu0
    %v357 = vadd.f32 0.0, %v356
    %v358 = vpop.f32.mrb[0].mxu0
    %359 = vmatprep.mubr.f32.mxu0 0.0
    %360 = vmatmul.mubr.f32.gmra.mrb[0].mxu0 %v46
    %v361 = vpop.f32.mrb[0].mxu0
    %v362 = vadd.f32 0.0, %v361
    %v363 = vpop.f32.mrb[0].mxu0
    %364 = vmatprep.mubr.f32.mxu0 0.0
    %365 = vmatmul.mubr.f32.gmra.mrb[0].mxu0 %v47
    %v366 = vpop.f32.mrb[0].mxu0
    %v367 = vadd.f32 0.0, %v366
    %v368 = vpop.f32.mrb[0].mxu0
    %369 = vmatprep.mubr.f32.mxu0 0.0
    %370 = vmatmul.mubr.f32.gmra.mrb[0].mxu0 %v48
    %v371 = vpop.f32.mrb[0].mxu0
    %v372 = vadd.f32 0.0, %v371
    %v373 = vpop.f32.mrb[0].mxu0
    %374 = vmatprep.mubr.f32.mxu0 0.0
    %375 = vmatmul.mubr.f32.gmra.mrb[0].mxu0 %v49
    %v376 = vpop.f32.mrb[0].mxu0
    %v377 = vadd.f32 0.0, %v376
    %v378 = vpop.f32.mrb[0].mxu0
    %379 = vmatprep.mubr.f32.mxu0 0.0
    %380 = vmatmul.mubr.f32.gmra.mrb[0].mxu0 %v50
    %v381 = vpop.f32.mrb[0].mxu0
    %v382 = vadd.f32 0.0, %v381
    %v383 = vpop.f32.mrb[0].mxu0
    %384 = vmatprep.mubr.f32.mxu0 0.0
    %385 = vmatmul.mubr.f32.gmra.mrb[0].mxu0 %v51
    %v386 = vpop.f32.mrb[0].mxu0
    %v387 = vadd.f32 0.0, %v386
    %v388 = vpop.f32.mrb[0].mxu0
    %389 = vmatprep.mubr.f32.mxu0 0.0
    %390 = vmatmul.mubr.f32.gmra.mrb[0].mxu0 %v52
    %v391 = vpop.f32.mrb[0].mxu0
    %v392 = vadd.f32 0.0, %v391
    %v393 = vpop.f32.mrb[0].mxu0
    %394 = vmatprep.mubr.f32.mxu0 0.0
    %395 = vmatmul.mubr.f32.gmra.mrb[0].mxu0 %v53
    %v396 = vpop.f32.mrb[0].mxu0
    %v397 = vadd.f32 0.0, %v396
    %v398 = vpop.f32.mrb[0].mxu0
    %399 = vmatprep.mubr.f32.mxu0 0.0
    %400 = vmatmul.mubr.f32.gmra.mrb[0].mxu0 %v54
    %v401 = vpop.f32.mrb[0].mxu0
    %v402 = vadd.f32 0.0, %v401
    %v403 = vpop.f32.mrb[0].mxu0
    %404 = vmatprep.mubr.f32.mxu0 0.0
    %405 = vmatmul.mubr.f32.gmra.mrb[0].mxu0 %v55
    %v406 = vpop.f32.mrb[0].mxu0
    %v407 = vadd.f32 0.0, %v406
    %v408 = vpop.f32.mrb[0].mxu0
    %409 = vdwg.mxu0
    %410 = vst [vmem:[#allocation7] sm:$0xff] %v171
    %411 = vst [vmem:[#allocation7 + $0x8] sm:$0xff] %v173
    %412 = vst [vmem:[#allocation7 + $0x10] sm:$0xff] %v332
    %413 = vst [vmem:[#allocation7 + $0x18] sm:$0xff] %v177
    %414 = vst [vmem:[#allocation7 + $0x20] sm:$0xff] %v179
    %415 = vst [vmem:[#allocation7 + $0x28] sm:$0xff] %v337
    %416 = vst [vmem:[#allocation7 + $0x30] sm:$0xff] %v183
    %417 = vst [vmem:[#allocation7 + $0x38] sm:$0xff] %v185
    %418 = vst [vmem:[#allocation7 + $0x40] sm:$0xff] %v342
    %419 = vst [vmem:[#allocation7 + $0x48] sm:$0xff] %v189
    %420 = vst [vmem:[#allocation7 + $0x50] sm:$0xff] %v191
    %421 = vst [vmem:[#allocation7 + $0x58] sm:$0xff] %v347
    %422 = vst [vmem:[#allocation7 + $0x60] sm:$0xff] %v195
    %423 = vst [vmem:[#allocation7 + $0x68] sm:$0xff] %v197
    %424 = vst [vmem:[#allocation7 + $0x70] sm:$0xff] %v352
    %425 = vst [vmem:[#allocation7 + $0x78] sm:$0xff] %v201
    %426 = vst [vmem:[#allocation7 + $0x80] sm:$0xff] %v203
    %427 = vst [vmem:[#allocation7 + $0x88] sm:$0xff] %v357
    %428 = vst [vmem:[#allocation7 + $0x90] sm:$0xff] %v207
    %429 = vst [vmem:[#allocation7 + $0x98] sm:$0xff] %v209
    %430 = vst [vmem:[#allocation7 + $0xa0] sm:$0xff] %v362
    %431 = vst [vmem:[#allocation7 + $0xa8] sm:$0xff] %v213
    %432 = vst [vmem:[#allocation7 + $0xb0] sm:$0xff] %v215
    %433 = vst [vmem:[#allocation7 + $0xb8] sm:$0xff] %v367
    %434 = vst [vmem:[#allocation7 + $0xc0] sm:$0xff] %v219
    %435 = vst [vmem:[#allocation7 + $0xc8] sm:$0xff] %v221
    %436 = vst [vmem:[#allocation7 + $0xd0] sm:$0xff] %v372
    %437 = vst [vmem:[#allocation7 + $0xd8] sm:$0xff] %v225
    %438 = vst [vmem:[#allocation7 + $0xe0] sm:$0xff] %v227
    %439 = vst [vmem:[#allocation7 + $0xe8] sm:$0xff] %v377
    %440 = vst [vmem:[#allocation7 + $0xf0] sm:$0xff] %v231
    %441 = vst [vmem:[#allocation7 + $0xf8] sm:$0xff] %v233
    %442 = vst [vmem:[#allocation7 + $0x100] sm:$0xff] %v382
    %443 = vst [vmem:[#allocation7 + $0x108] sm:$0xff] %v237
    %444 = vst [vmem:[#allocation7 + $0x110] sm:$0xff] %v239
    %445 = vst [vmem:[#allocation7 + $0x118] sm:$0xff] %v387
    %446 = vst [vmem:[#allocation7 + $0x120] sm:$0xff] %v243
    %447 = vst [vmem:[#allocation7 + $0x128] sm:$0xff] %v245
    %448 = vst [vmem:[#allocation7 + $0x130] sm:$0xff] %v392
    %449 = vst [vmem:[#allocation7 + $0x138] sm:$0xff] %v249
    %450 = vst [vmem:[#allocation7 + $0x140] sm:$0xff] %v251
    %451 = vst [vmem:[#allocation7 + $0x148] sm:$0xff] %v397
    %452 = vst [vmem:[#allocation7 + $0x150] sm:$0xff] %v255
    %453 = vst [vmem:[#allocation7 + $0x158] sm:$0xff] %v257
    %454 = vst [vmem:[#allocation7 + $0x160] sm:$0xff] %v402
    %455 = vst [vmem:[#allocation7 + $0x168] sm:$0xff] %v261
    %456 = vst [vmem:[#allocation7 + $0x170] sm:$0xff] %v263
    %457 = vst [vmem:[#allocation7 + $0x178] sm:$0xff] %v407
    // Predicated region
    $region18: #{tpu_custom_call.1} parent=1 // pred_check
      _
    $region19: #{tpu_custom_call.1} parent=1 // pred_check_branch
      %459 = sbr.rel (0) target = $region21
    $region20: #{tpu_custom_call.1} parent=1 // pred_region
      %s461 = ssub.s32 6144, 6144
      %462 = vsyncadd [#allocation4], %s461
      %s463 = sshll.u32 [#allocation7], 4
      %s464 = int_to_ptr.vmem [resolvable:$true] %s463
      %469 = dma.vmem_to_hbm [thread:$0]  %s464, 6144, %s2, [#allocation4], 384, 384, 24
    $region21: #{tpu_custom_call.1} parent=1 // pred_fallthru
      _
    // Predicated region
    $region22: #{tpu_custom_call.1} parent=1 // pred_check
      _
    $region23: #{tpu_custom_call.1} parent=1 // pred_check_branch
      %471 = sbr.rel (0) target = $region25
    $region24: #{tpu_custom_call.1} parent=1 // pred_region
      %472 = dma.done [#allocation4], 6144
    $region25: #{tpu_custom_call.1} parent=1 // pred_fallthru
      _
    %473 = vsyncpa [#allocation3], 1
    %474 = vsyncpa [#allocation6], 1
    %475 = vsyncpa [#allocation4], 1

</llo_original>
